<compile_context>
chip_gen: v6e
topology: v6e:2x2x1
jax: 0.10.0
libtpu: 0.0.40
codegen_flags: <defaults>
</compile_context>

<pallas_src>
import functools

import jax
import jax.numpy as jnp
from jax.experimental import pallas as pl
from jax.experimental.pallas import tpu as pltpu


# --------------------------------------------------------------------------- device info
def _tpu_kind() -> str:
    try:
        return jax.devices()[0].device_kind.lower()
    except Exception:
        return ""


_KIND = _tpu_kind()
_IS_V7 = "v7" in _KIND
_MXU_256 = _IS_V7 or ("v6" in _KIND)            # 2x 256x256 MXU on v6e / v7x
_TWO_TC = _IS_V7                                # 2 TensorCores per chip on v7x
_DEFAULT_TILE_M = 256 if _IS_V7 else 512        # v7x: 64 MiB VMEM -> smaller tiles
_VMEM_CAP = (48 << 20) if _IS_V7 else (100 << 20)  # headroom below physical VMEM


def _round_up(x, m):
    return ((x + m - 1) // m) * m


def _cdiv(a, b):
    return -(-a // b)


def _feature_pad(d):
    # Lane-pad feature dims: 128 everywhere; 256 on v6e/v7x for wide layers so a
    # single vmatmul pass fills the full 256-wide MXU tile.  Zero padding is exact.
    mult = 256 if (_MXU_256 and d > 128) else 128
    return _round_up(d, mult)


def _vmem_bytes(tm, in_p, h0_p, h1_p, out_p):
    x_tiles = 2 * tm * in_p * 4                                   # f32 x tile, 2 buffers
    out_tiles = 2 * tm * out_p * 4                                # f32 out tile, 2 buffers
    weights = 2 * 2 * (in_p * h0_p + h0_p * h1_p + h1_p * out_p)  # bf16, 2 buffers each
    biases = 2 * 4 * (h0_p + h1_p + out_p)
    live = tm * in_p * 2 + tm * (h0_p + h1_p) * (4 + 2)           # bf16 x + f32 acc + bf16 h
    return x_tiles + out_tiles + weights + biases + live


# --------------------------------------------------------------------------- kernel
def _mlp_kernel(x_ref, w0_ref, b0_ref, w1_ref, b1_ref, wo_ref, bo_ref, o_ref):
    # In-kernel f32 -> bf16 cast of the activation tile (VPU work hidden under MXU).
    x = x_ref[...].astype(jnp.bfloat16)
    # Layer 0: Linear + ReLU (the only ReLU the torch forward actually applies).
    h = jnp.dot(x, w0_ref[...], preferred_element_type=jnp.float32)
    h = jnp.maximum(h + b0_ref[...], 0.0).astype(jnp.bfloat16)
    # Hidden layer 1: Linear, NO ReLU (matches the Sequential contents).
    h = jnp.dot(h, w1_ref[...], preferred_element_type=jnp.float32) + b1_ref[...]
    h = h.astype(jnp.bfloat16)
    # Output layer: Linear, no activation.  Lane-dense f32 store.
    o_ref[...] = jnp.dot(h, wo_ref[...], preferred_element_type=jnp.float32) + bo_ref[...]


# --------------------------------------------------------------------------- param prep (once)
def _pad2d(a, rows, cols, dtype):
    a = jnp.asarray(a, dtype)
    return jnp.pad(a, ((0, rows - a.shape[0]), (0, cols - a.shape[1])))


def prepare_params(params):
    """Pad feature dims + cast weights to bf16 ONCE (hoisted out of the forward path)."""
    in_dim, h0 = params["W0"].shape
    h1 = params["W1"].shape[1]
    out_dim = params["Wo"].shape[1]
    in_p, h0_p, h1_p, out_p = map(_feature_pad, (in_dim, h0, h1, out_dim))
    return {
        "W0": _pad2d(params["W0"], in_p, h0_p, jnp.bfloat16),
        "b0": _pad2d(params["b0"], 1, h0_p, jnp.float32),
        "W1": _pad2d(params["W1"], h0_p, h1_p, jnp.bfloat16),
        "b1": _pad2d(params["b1"], 1, h1_p, jnp.float32),
        "Wo": _pad2d(params["Wo"], h1_p, out_p, jnp.bfloat16),
        "bo": _pad2d(params["bo"], 1, out_p, jnp.float32),
    }


# --------------------------------------------------------------------------- forward wrapper
@functools.partial(jax.jit, static_argnames=("out_dim", "tile_m"))
def fully_connected_forward(x, prepped, *, out_dim, tile_m=None):
    """x: [batch, in_dim] f32.  prepped: output of prepare_params().  Returns f32 [batch, out_dim]."""
    batch, in_dim = x.shape
    w0, b0 = prepped["W0"], prepped["b0"]
    w1, b1 = prepped["W1"], prepped["b1"]
    wo, bo = prepped["Wo"], prepped["bo"]
    in_p, h0_p = w0.shape
    h1_p = w1.shape[1]
    out_p = wo.shape[1]
    assert in_dim <= in_p and out_dim <= out_p

    # ---- batch tiling: adaptive tm (<= 15 rows pad), >= 2 steps on v7x, VMEM-budgeted.
    cap = tile_m if tile_m is not None else _DEFAULT_TILE_M
    grid_n = max(1, _cdiv(batch, cap))
    if _TWO_TC and batch >= 32:
        grid_n = max(grid_n, 2)                    # feed both TensorCores on v7x
    tm = _round_up(_cdiv(batch, grid_n), 16)       # bf16 sublane packing
    while tm > 16 and _vmem_bytes(tm, in_p, h0_p, h1_p, out_p) > int(0.9 * _VMEM_CAP):
        grid_n += 1
        tm = _round_up(_cdiv(batch, grid_n), 16)
    grid_n = _cdiv(batch, tm)
    batch_p = grid_n * tm
    # TODO(synk): if the three resident (padded, bf16) weights alone exceed the VMEM
    # cap (very wide hiddens, esp. on v7x), a K-tiled multi-call / fp8-weight fallback
    # is needed instead of the fully fused all-resident kernel.

    # ---- pad x only if shapes don't already align (f32; bf16 cast happens in-kernel).
    if batch_p != batch or in_p != in_dim:
        x = jnp.pad(x, ((0, batch_p - batch), (0, in_p - in_dim)))

    flops = 2 * batch_p * (in_p * h0_p + h0_p * h1_p + h1_p * out_p)
    bytes_accessed = (
        batch_p * in_p * 4 + batch_p * out_p * 4
        + 2 * (in_p * h0_p + h0_p * h1_p + h1_p * out_p)
        + 4 * (h0_p + h1_p + out_p))
    vmem_limit = min(
        _VMEM_CAP,
        max(32 << 20, int(1.5 * _vmem_bytes(tm, in_p, h0_p, h1_p, out_p)) + (4 << 20)))

    in_specs = [
        pl.BlockSpec((tm, in_p), lambda i: (i, 0)),      # x tile (pipelined, f32)
        pl.BlockSpec((in_p, h0_p), lambda i: (0, 0)),    # W0 (VMEM-resident)
        pl.BlockSpec((1, h0_p), lambda i: (0, 0)),       # b0
        pl.BlockSpec((h0_p, h1_p), lambda i: (0, 0)),    # W1
        pl.BlockSpec((1, h1_p), lambda i: (0, 0)),       # b1
        pl.BlockSpec((h1_p, out_p), lambda i: (0, 0)),   # Wo
        pl.BlockSpec((1, out_p), lambda i: (0, 0)),      # bo
    ]
    out_spec = pl.BlockSpec((tm, out_p), lambda i: (i, 0))

    y = pl.pallas_call(
        _mlp_kernel,
        out_shape=jax.ShapeDtypeStruct((batch_p, out_p), jnp.float32),
        grid=(grid_n,),
        in_specs=in_specs,
        out_specs=out_spec,
        compiler_params=pltpu.CompilerParams(
            dimension_semantics=("parallel",),   # shard batch tiles across TCs on v7x
            vmem_limit_bytes=vmem_limit,
        ),
        cost_estimate=pl.CostEstimate(
            flops=flops, transcendentals=0, bytes_accessed=bytes_accessed),
    )(x, w0, b0, w1, b1, wo, bo)

    # Strip padding only when there is any (skips an extra HBM pass when aligned).
    if batch_p != batch or out_p != out_dim:
        y = y[:batch, :out_dim]
    return y


# --------------------------------------------------------------------------- init & reference
def init_params(key, in_dim, hiddens, out_dim):
    """Deterministic init mimicking torch.nn.Linear's uniform(-1/sqrt(fan_in), 1/sqrt(fan_in))."""
    dims = [in_dim] + list(hiddens) + [out_dim]
    names = ["0", "1", "o"]
    params = {}
    for i, name in enumerate(names):
        fan_in, fan_out = dims[i], dims[i + 1]
        key, kw, kb = jax.random.split(key, 3)
        bound = 1.0 / jnp.sqrt(jnp.float32(fan_in))
        params[f"W{name}"] = jax.random.uniform(
            kw, (fan_in, fan_out), jnp.float32, -bound, bound)
        params[f"b{name}"] = jax.random.uniform(
            kb, (1, fan_out), jnp.float32, -bound, bound)
    return params


def reference_forward(x, p):
    """Same math as the kernel (bf16 operands, f32 accumulation, only first ReLU)."""
    xb = x.astype(jnp.bfloat16)
    h = jnp.dot(xb, p["W0"].astype(jnp.bfloat16),
                preferred_element_type=jnp.float32) + p["b0"]
    h = jnp.maximum(h, 0.0).astype(jnp.bfloat16)
    h = jnp.dot(h, p["W1"].astype(jnp.bfloat16),
                preferred_element_type=jnp.float32) + p["b1"]
    h = h.astype(jnp.bfloat16)
    return jnp.dot(h, p["Wo"].astype(jnp.bfloat16),
                   preferred_element_type=jnp.float32) + p["bo"]


# --------------------------------------------------------------------------- demo
if __name__ == "__main__":
    # Small shapes consistent with FullyConnected(in_dim=4, hiddens=[32, 16], out_dim=8).
    # NOTE: at these toy sizes the kernel is pure launch overhead; the tiling /
    # bf16 / lane-padding / VMEM-budgeting changes pay off at realistic widths.
    batch, in_dim, hiddens, out_dim = 2, 4, [32, 16], 8

    key = jax.random.PRNGKey(0)
    key, kx = jax.random.split(key)
    x = jax.random.normal(kx, (batch, in_dim), jnp.float32)
    params = init_params(key, in_dim, hiddens, out_dim)

    prepped = prepare_params(params)              # pad + bf16-cast weights ONCE
    y = fully_connected_forward(x, prepped, out_dim=out_dim)
    y = jax.block_until_ready(y)

    y_ref = reference_forward(x, params)
    assert y.shape == (batch, out_dim)
    assert jnp.allclose(y, y_ref, atol=2e-2, rtol=2e-2), "mismatch vs. reference"

    print("KERNEL_OK")
</pallas_src>

<mosaic_0001>
module attributes {stable_mosaic.version = 11 : i64} {
  func.func @_mlp_kernel(%arg0: i32, %arg1: memref<16x128xf32, #tpu.memory_space<vmem>>, %arg2: memref<128x128xbf16, #tpu.memory_space<vmem>>, %arg3: memref<1x128xf32, #tpu.memory_space<vmem>>, %arg4: memref<128x128xbf16, #tpu.memory_space<vmem>>, %arg5: memref<1x128xf32, #tpu.memory_space<vmem>>, %arg6: memref<128x128xbf16, #tpu.memory_space<vmem>>, %arg7: memref<1x128xf32, #tpu.memory_space<vmem>>, %arg8: memref<16x128xf32, #tpu.memory_space<vmem>>) attributes {dimension_semantics = [#tpu.dimension_semantics<parallel>], iteration_bounds = array<i64: 1>, scalar_prefetch = 0 : i64, scratch_operands = 0 : i64, tpu.core_type = #tpu.core_type<tc>, window_params = [{transform_indices = @transform_0, window_bounds = array<i64: 16, 128>}, {pipeline_mode = #tpu.pipeline_mode<synchronous>, transform_indices = @transform_1, window_bounds = array<i64: 128, 128>}, {pipeline_mode = #tpu.pipeline_mode<synchronous>, transform_indices = @transform_2, window_bounds = array<i64: 1, 128>}, {pipeline_mode = #tpu.pipeline_mode<synchronous>, transform_indices = @transform_3, window_bounds = array<i64: 128, 128>}, {pipeline_mode = #tpu.pipeline_mode<synchronous>, transform_indices = @transform_4, window_bounds = array<i64: 1, 128>}, {pipeline_mode = #tpu.pipeline_mode<synchronous>, transform_indices = @transform_5, window_bounds = array<i64: 128, 128>}, {pipeline_mode = #tpu.pipeline_mode<synchronous>, transform_indices = @transform_6, window_bounds = array<i64: 1, 128>}, {transform_indices = @transform_7, window_bounds = array<i64: 16, 128>}]} {
    %c0 = arith.constant 0 : index
    %c0_0 = arith.constant 0 : index
    %0 = vector.load %arg1[%c0, %c0_0] : memref<16x128xf32, #tpu.memory_space<vmem>>, vector<16x128xf32>
    %1 = arith.truncf %0 : vector<16x128xf32> to vector<16x128xbf16>
    %c0_1 = arith.constant 0 : index
    %c0_2 = arith.constant 0 : index
    %2 = vector.load %arg2[%c0_1, %c0_2] : memref<128x128xbf16, #tpu.memory_space<vmem>>, vector<128x128xbf16>
    %cst = arith.constant dense<0.000000e+00> : vector<16x128xf32>
    %3 = tpu.matmul %1, %2, %cst {dimension_numbers = #tpu.dot_dimension_numbers<[1], [0], [0], [1], [0, 0, 1, 1], [], []>} : vector<16x128xbf16>, vector<128x128xbf16>, vector<16x128xf32> -> vector<16x128xf32>
    %c0_3 = arith.constant 0 : index
    %c0_4 = arith.constant 0 : index
    %4 = vector.load %arg3[%c0_3, %c0_4] : memref<1x128xf32, #tpu.memory_space<vmem>>, vector<1x128xf32>
    %5 = vector.broadcast %4 : vector<1x128xf32> to vector<16x128xf32>
    %6 = arith.addf %3, %5 : vector<16x128xf32>
    %cst_5 = arith.constant 0.000000e+00 : f32
    %7 = vector.broadcast %cst_5 : f32 to vector<16x128xf32>
    %8 = arith.maximumf %6, %7 : vector<16x128xf32>
    %9 = arith.truncf %8 : vector<16x128xf32> to vector<16x128xbf16>
    %c0_6 = arith.constant 0 : index
    %c0_7 = arith.constant 0 : index
    %10 = vector.load %arg4[%c0_6, %c0_7] : memref<128x128xbf16, #tpu.memory_space<vmem>>, vector<128x128xbf16>
    %cst_8 = arith.constant dense<0.000000e+00> : vector<16x128xf32>
    %11 = tpu.matmul %9, %10, %cst_8 {dimension_numbers = #tpu.dot_dimension_numbers<[1], [0], [0], [1], [0, 0, 1, 1], [], []>} : vector<16x128xbf16>, vector<128x128xbf16>, vector<16x128xf32> -> vector<16x128xf32>
    %c0_9 = arith.constant 0 : index
    %c0_10 = arith.constant 0 : index
    %12 = vector.load %arg5[%c0_9, %c0_10] : memref<1x128xf32, #tpu.memory_space<vmem>>, vector<1x128xf32>
    %13 = vector.broadcast %12 : vector<1x128xf32> to vector<16x128xf32>
    %14 = arith.addf %11, %13 : vector<16x128xf32>
    %15 = arith.truncf %14 : vector<16x128xf32> to vector<16x128xbf16>
    %c0_11 = arith.constant 0 : index
    %c0_12 = arith.constant 0 : index
    %16 = vector.load %arg6[%c0_11, %c0_12] : memref<128x128xbf16, #tpu.memory_space<vmem>>, vector<128x128xbf16>
    %cst_13 = arith.constant dense<0.000000e+00> : vector<16x128xf32>
    %17 = tpu.matmul %15, %16, %cst_13 {dimension_numbers = #tpu.dot_dimension_numbers<[1], [0], [0], [1], [0, 0, 1, 1], [], []>} : vector<16x128xbf16>, vector<128x128xbf16>, vector<16x128xf32> -> vector<16x128xf32>
    %c0_14 = arith.constant 0 : index
    %c0_15 = arith.constant 0 : index
    %18 = vector.load %arg7[%c0_14, %c0_15] : memref<1x128xf32, #tpu.memory_space<vmem>>, vector<1x128xf32>
    %19 = vector.broadcast %18 : vector<1x128xf32> to vector<16x128xf32>
    %20 = arith.addf %17, %19 : vector<16x128xf32>
    %c0_16 = arith.constant 0 : index
    %c0_17 = arith.constant 0 : index
    %21 = vector.load %arg8[%c0_16, %c0_17] : memref<16x128xf32, #tpu.memory_space<vmem>>, vector<16x128xf32>
    tpu.vector_store %arg8[%c0_16, %c0_17], %20 {strides = array<i32>} : memref<16x128xf32, #tpu.memory_space<vmem>>, vector<16x128xf32>,
    return
  }
  func.func @transform_0(%arg0: i32) -> (i32, i32) {
    %c0_i32 = arith.constant 0 : i32
    %c0_i32_0 = arith.constant 0 : i32
    return %arg0, %c0_i32 : i32, i32
  }
  func.func @transform_1(%arg0: i32) -> (i32, i32) {
    %c0_i32 = arith.constant 0 : i32
    %c0_i32_0 = arith.constant 0 : i32
    %c0_i32_1 = arith.constant 0 : i32
    return %c0_i32, %c0_i32_0 : i32, i32
  }
  func.func @transform_2(%arg0: i32) -> (i32, i32) {
    %c0_i32 = arith.constant 0 : i32
    %c0_i32_0 = arith.constant 0 : i32
    %c0_i32_1 = arith.constant 0 : i32
    return %c0_i32, %c0_i32_0 : i32, i32
  }
  func.func @transform_3(%arg0: i32) -> (i32, i32) {
    %c0_i32 = arith.constant 0 : i32
    %c0_i32_0 = arith.constant 0 : i32
    %c0_i32_1 = arith.constant 0 : i32
    return %c0_i32, %c0_i32_0 : i32, i32
  }
  func.func @transform_4(%arg0: i32) -> (i32, i32) {
    %c0_i32 = arith.constant 0 : i32
    %c0_i32_0 = arith.constant 0 : i32
    %c0_i32_1 = arith.constant 0 : i32
    return %c0_i32, %c0_i32_0 : i32, i32
  }
  func.func @transform_5(%arg0: i32) -> (i32, i32) {
    %c0_i32 = arith.constant 0 : i32
    %c0_i32_0 = arith.constant 0 : i32
    %c0_i32_1 = arith.constant 0 : i32
    return %c0_i32, %c0_i32_0 : i32, i32
  }
  func.func @transform_6(%arg0: i32) -> (i32, i32) {
    %c0_i32 = arith.constant 0 : i32
    %c0_i32_0 = arith.constant 0 : i32
    %c0_i32_1 = arith.constant 0 : i32
    return %c0_i32, %c0_i32_0 : i32, i32
  }
  func.func @transform_7(%arg0: i32) -> (i32, i32) {
    %c0_i32 = arith.constant 0 : i32
    %c0_i32_0 = arith.constant 0 : i32
    return %arg0, %c0_i32 : i32, i32
  }
}

</mosaic_0001>

<llo_original>
// kernel: fully_connected_forward.1
$region0: #{fully_connected_forward.1}
  #allocation0 [shape = 'u32[]', space=smem, size = 0x4, offset = 0x4, fixed_abs, tag = 'smem constant byte address 0x4 - core index']
  #allocation1 [shape = 'u32[144,128]{1,0:T(1,128)}', space=vmem, size = 0x12000, scoped, tag = 'internal scratch']
  %s0 = inlined_call_operand.vmem [shape: f32[16,128], index: 0, kind: input, shape index: {}]
  %s1 = inlined_call_operand.hbm [shape: bf16[128,128], index: 1, kind: input, shape index: {}]
  %s2 = inlined_call_operand.vmem [shape: f32[1,128], index: 2, kind: input, shape index: {}]
  %s3 = inlined_call_operand.hbm [shape: bf16[128,128], index: 3, kind: input, shape index: {}]
  %s4 = inlined_call_operand.vmem [shape: f32[1,128], index: 4, kind: input, shape index: {}]
  %s5 = inlined_call_operand.hbm [shape: bf16[128,128], index: 5, kind: input, shape index: {}]
  %s6 = inlined_call_operand.vmem [shape: f32[1,128], index: 6, kind: input, shape index: {}]
  %s7 = inlined_call_operand.vmem [shape: f32[16,128], index: 7, kind: output, shape index: {}]
  %s8 = sld [smem:[#allocation0]]
  $region50: #{fully_connected_forward.1} parent=0
    _
  %s10 = ssub.s32 1, %s8
  %s11 = scalar_select 0, %s10, %s8
  $region1: #{fully_connected_forward.1} parent=0
    #allocation2 [shape = 'u8[32768]{0}', space=vmem, size = 0x8000, scoped, tag = 'input window, operand 1, single buffered']
    #allocation3 [shape = 's32[1]{0}', space=sflag, size = 0x4, scoped, tag = 'scoped memory for fully_connected_forward.1']
    #allocation4 [shape = 'u8[32768]{0}', space=vmem, size = 0x8000, scoped, tag = 'input window, operand 3, single buffered']
    #allocation5 [shape = 's32[1]{0}', space=sflag, size = 0x4, scoped, tag = 'scoped memory for fully_connected_forward.1']
    #allocation6 [shape = 'u8[32768]{0}', space=vmem, size = 0x8000, scoped, tag = 'input window, operand 5, single buffered']
    %12 = vsyncpa [#allocation3], 0
    %13 = vsyncpa [#allocation5], 0
    // Predicated region
    $region2: #{fully_connected_forward.1} parent=1 // pred_check
      _
    $region3: #{fully_connected_forward.1} parent=1 // pred_check_branch
      %15 = sbr.rel (0) target = $region5
    $region4: #{fully_connected_forward.1} parent=1 // pred_region
      _
    $region5: #{fully_connected_forward.1} parent=1 // pred_fallthru
      _
    // Predicated region
    $region6: #{fully_connected_forward.1} parent=1 // pred_check
      _
    $region7: #{fully_connected_forward.1} parent=1 // pred_check_branch
      %17 = sbr.rel (0) target = $region9
    $region8: #{fully_connected_forward.1} parent=1 // pred_region
      %s19 = ssub.s32 1024, 1024
      %20 = vsyncadd [#allocation3], %s19
      %s21 = sshll.u32 [#allocation2], 4
      %s22 = int_to_ptr.vmem [resolvable:$true] %s21
      %27 = dma.hbm_to_vmem [thread:$0]  %s1, 1024, %s22, [#allocation3], 64, 64, 4
    $region9: #{fully_connected_forward.1} parent=1 // pred_fallthru
      _
    // Predicated region
    $region10: #{fully_connected_forward.1} parent=1 // pred_check
      _
    $region11: #{fully_connected_forward.1} parent=1 // pred_check_branch
      %29 = sbr.rel (0) target = $region13
    $region12: #{fully_connected_forward.1} parent=1 // pred_region
      _
    $region13: #{fully_connected_forward.1} parent=1 // pred_fallthru
      _
    // Predicated region
    $region14: #{fully_connected_forward.1} parent=1 // pred_check
      _
    $region15: #{fully_connected_forward.1} parent=1 // pred_check_branch
      %31 = sbr.rel (0) target = $region17
    $region16: #{fully_connected_forward.1} parent=1 // pred_region
      %s33 = ssub.s32 1024, 1024
      %34 = vsyncadd [#allocation5], %s33
      %s35 = sshll.u32 [#allocation4], 4
      %s36 = int_to_ptr.vmem [resolvable:$true] %s35
      %41 = dma.hbm_to_vmem [thread:$0]  %s3, 1024, %s36, [#allocation5], 64, 64, 4
    $region17: #{fully_connected_forward.1} parent=1 // pred_fallthru
      _
    // Predicated region
    $region18: #{fully_connected_forward.1} parent=1 // pred_check
      _
    $region19: #{fully_connected_forward.1} parent=1 // pred_check_branch
      %43 = sbr.rel (0) target = $region21
    $region20: #{fully_connected_forward.1} parent=1 // pred_region
      _
    $region21: #{fully_connected_forward.1} parent=1 // pred_fallthru
      _
    // Predicated region
    $region22: #{fully_connected_forward.1} parent=1 // pred_check
      _
    $region23: #{fully_connected_forward.1} parent=1 // pred_check_branch
      %45 = sbr.rel (0) target = $region25
    $region24: #{fully_connected_forward.1} parent=1 // pred_region
      %s47 = ssub.s32 1024, 1024
      %48 = vsyncadd [#allocation5], %s47
      %s49 = sshll.u32 [#allocation6], 4
      %s50 = int_to_ptr.vmem [resolvable:$true] %s49
      %55 = dma.hbm_to_vmem [thread:$0]  %s5, 1024, %s50, [#allocation5], 64, 64, 4
    $region25: #{fully_connected_forward.1} parent=1 // pred_fallthru
      _
    // Predicated region
    $region26: #{fully_connected_forward.1} parent=1 // pred_check
      _
    $region27: #{fully_connected_forward.1} parent=1 // pred_check_branch
      %57 = sbr.rel (0) target = $region29
    $region28: #{fully_connected_forward.1} parent=1 // pred_region
      _
    $region29: #{fully_connected_forward.1} parent=1 // pred_fallthru
      _
    // Predicated region
    $region30: #{fully_connected_forward.1} parent=1 // pred_check
      _
    $region31: #{fully_connected_forward.1} parent=1 // pred_check_branch
      %59 = sbr.rel (0) target = $region33
    $region32: #{fully_connected_forward.1} parent=1 // pred_region
      %60 = dma.done [#allocation3], 1024
    $region33: #{fully_connected_forward.1} parent=1 // pred_fallthru
      _
    // Predicated region
    $region34: #{fully_connected_forward.1} parent=1 // pred_check
      _
    $region35: #{fully_connected_forward.1} parent=1 // pred_check_branch
      %62 = sbr.rel (0) target = $region37
    $region36: #{fully_connected_forward.1} parent=1 // pred_region
      %63 = dma.done [#allocation5], 1024
    $region37: #{fully_connected_forward.1} parent=1 // pred_fallthru
      _
    // Predicated region
    $region38: #{fully_connected_forward.1} parent=1 // pred_check
      _
    $region39: #{fully_connected_forward.1} parent=1 // pred_check_branch
      %65 = sbr.rel (0) target = $region41
    $region40: #{fully_connected_forward.1} parent=1 // pred_region
      %66 = dma.done [#allocation5], 1024
    $region41: #{fully_connected_forward.1} parent=1 // pred_fallthru
      _
    %v68 = vld [vmem:[%s0] sm:$0xff]
    %v69 = vld [vmem:[%s0 + $0x8] sm:$0xff]
    %v70 = vpack.c.bf16 %v69, %v68
    %v71 = vld [vmem:[#allocation2] sm:$0xf]
    %v72 = vld [vmem:[#allocation2 + $0x4] sm:$0xf]
    %v73 = vld [vmem:[#allocation2 + $0x8] sm:$0xf]
    %v74 = vld [vmem:[#allocation2 + $0xc] sm:$0xf]
    %v75 = vld [vmem:[#allocation2 + $0x10] sm:$0xf]
    %v76 = vld [vmem:[#allocation2 + $0x14] sm:$0xf]
    %v77 = vld [vmem:[#allocation2 + $0x18] sm:$0xf]
    %v78 = vld [vmem:[#allocation2 + $0x1c] sm:$0xf]
    %v79 = vld [vmem:[#allocation2 + $0x20] sm:$0xf]
    %v80 = vld [vmem:[#allocation2 + $0x24] sm:$0xf]
    %v81 = vld [vmem:[#allocation2 + $0x28] sm:$0xf]
    %v82 = vld [vmem:[#allocation2 + $0x2c] sm:$0xf]
    %v83 = vld [vmem:[#allocation2 + $0x30] sm:$0xf]
    %v84 = vld [vmem:[#allocation2 + $0x34] sm:$0xf]
    %v85 = vld [vmem:[#allocation2 + $0x38] sm:$0xf]
    %v86 = vld [vmem:[#allocation2 + $0x3c] sm:$0xf]
    %v87 = vld [vmem:[%s2] sm:$0x1]
    %v89 = vlaneseq
    %v90 = vshrl.u32 %v89, 7
    %v91 = vsub.s32 0, %v90
    %v92 = vrot.slane %v87, %v91
    %v110 = vunpack.c.l.b16 %v71
    %v111 = vunpack.c.l.b16 %v72
    %v112 = vunpack.c.l.b16 %v73
    %v113 = vunpack.c.l.b16 %v74
    %v114 = vunpack.c.l.b16 %v75
    %v115 = vunpack.c.l.b16 %v76
    %v116 = vunpack.c.l.b16 %v77
    %v117 = vunpack.c.l.b16 %v78
    %v118 = vunpack.c.l.b16 %v79
    %v119 = vunpack.c.l.b16 %v80
    %v120 = vunpack.c.l.b16 %v81
    %v121 = vunpack.c.l.b16 %v82
    %v122 = vunpack.c.l.b16 %v83
    %v123 = vunpack.c.l.b16 %v84
    %v124 = vunpack.c.l.b16 %v85
    %v125 = vunpack.c.l.b16 %v86
    %v126 = vpack.c.b16 %v111, %v110
    %v127 = vpack.c.b16 %v113, %v112
    %v128 = vpack.c.b16 %v115, %v114
    %v129 = vpack.c.b16 %v117, %v116
    %v130 = vpack.c.b16 %v119, %v118
    %v131 = vpack.c.b16 %v121, %v120
    %v132 = vpack.c.b16 %v123, %v122
    %v133 = vpack.c.b16 %v125, %v124
    %142 = vmatprep.subr.bf16.mxu0 0
    %143 = vmatpush1.bf16.msra.mxu0 %v133
    %144 = vmatprep.subr.bf16.mxu0 0
    %145 = vmatpush1.bf16.msra.mxu0 %v132
    %146 = vmatprep.subr.bf16.mxu0 0
    %147 = vmatpush1.bf16.msra.mxu0 %v131
    %148 = vmatprep.subr.bf16.mxu0 0
    %149 = vmatpush1.bf16.msra.mxu0 %v130
    %150 = vmatprep.subr.bf16.mxu0 0
    %151 = vmatpush1.bf16.msra.mxu0 %v129
    %152 = vmatprep.subr.bf16.mxu0 0
    %153 = vmatpush1.bf16.msra.mxu0 %v128
    %154 = vmatprep.subr.bf16.mxu0 0
    %155 = vmatpush1.bf16.msra.mxu0 %v127
    %156 = vmatprep.subr.bf16.mxu0 0
    %157 = vmatpush1.bf16.msra.mxu0 %v126
    %158 = vmatprep.subr.bf16.mxu0 0
    %159 = vmatpush2.bf16.msra.mxu0 0
    %160 = vmatprep.subr.bf16.mxu0 0
    %161 = vmatpush2.bf16.msra.mxu0 0
    %162 = vmatprep.subr.bf16.mxu0 0
    %163 = vmatpush2.bf16.msra.mxu0 0
    %164 = vmatprep.subr.bf16.mxu0 0
    %165 = vmatpush2.bf16.msra.mxu0 0
    %166 = vmatprep.subr.bf16.mxu0 0
    %167 = vmatpush2.bf16.msra.mxu0 0
    %168 = vmatprep.subr.bf16.mxu0 0
    %169 = vmatpush2.bf16.msra.mxu0 0
    %170 = vmatprep.subr.bf16.mxu0 0
    %171 = vmatpush2.bf16.msra.mxu0 0
    %172 = vmatprep.subr.bf16.mxu0 0
    %173 = vmatpush2.bf16.msra.mxu0 0
    %174 = vmatprep.mubr.bf16.mxu0 0
    %175 = vmatmul.mubr.bf16.gmra.mxu0 %v70
    %v176 = vpop.f32.mrf.mxu0
    %v177 = vadd.f32 %v92, %v176
    %v178 = vpop.f32.mrf.mxu0
    %v179 = vpop.f32.mrf.mxu0
    %v180 = vadd.f32 %v92, %v179
    %v181 = vpop.f32.mrf.mxu0
    %182 = vdwg.mxu0
    %v183 = vmax.f32 %v177, 0.0
    %v184 = vmax.f32 %v180, 0.0
    %v185 = vpack.c.bf16 %v184, %v183
    %v186 = vld [vmem:[#allocation4] sm:$0xf]
    %v187 = vld [vmem:[#allocation4 + $0x4] sm:$0xf]
    %v188 = vld [vmem:[#allocation4 + $0x8] sm:$0xf]
    %v189 = vld [vmem:[#allocation4 + $0xc] sm:$0xf]
    %v190 = vld [vmem:[#allocation4 + $0x10] sm:$0xf]
    %v191 = vld [vmem:[#allocation4 + $0x14] sm:$0xf]
    %v192 = vld [vmem:[#allocation4 + $0x18] sm:$0xf]
    %v193 = vld [vmem:[#allocation4 + $0x1c] sm:$0xf]
    %v194 = vld [vmem:[#allocation4 + $0x20] sm:$0xf]
    %v195 = vld [vmem:[#allocation4 + $0x24] sm:$0xf]
    %v196 = vld [vmem:[#allocation4 + $0x28] sm:$0xf]
    %v197 = vld [vmem:[#allocation4 + $0x2c] sm:$0xf]
    %v198 = vld [vmem:[#allocation4 + $0x30] sm:$0xf]
    %v199 = vld [vmem:[#allocation4 + $0x34] sm:$0xf]
    %v200 = vld [vmem:[#allocation4 + $0x38] sm:$0xf]
    %v201 = vld [vmem:[#allocation4 + $0x3c] sm:$0xf]
    %v202 = vld [vmem:[%s4] sm:$0x1]
    %v204 = vlaneseq
    %v205 = vshrl.u32 %v204, 7
    %v206 = vsub.s32 0, %v205
    %v207 = vrot.slane %v202, %v206
    %v225 = vunpack.c.l.b16 %v186
    %v226 = vunpack.c.l.b16 %v187
    %v227 = vunpack.c.l.b16 %v188
    %v228 = vunpack.c.l.b16 %v189
    %v229 = vunpack.c.l.b16 %v190
    %v230 = vunpack.c.l.b16 %v191
    %v231 = vunpack.c.l.b16 %v192
    %v232 = vunpack.c.l.b16 %v193
    %v233 = vunpack.c.l.b16 %v194
    %v234 = vunpack.c.l.b16 %v195
    %v235 = vunpack.c.l.b16 %v196
    %v236 = vunpack.c.l.b16 %v197
    %v237 = vunpack.c.l.b16 %v198
    %v238 = vunpack.c.l.b16 %v199
    %v239 = vunpack.c.l.b16 %v200
    %v240 = vunpack.c.l.b16 %v201
    %v241 = vpack.c.b16 %v226, %v225
    %v242 = vpack.c.b16 %v228, %v227
    %v243 = vpack.c.b16 %v230, %v229
    %v244 = vpack.c.b16 %v232, %v231
    %v245 = vpack.c.b16 %v234, %v233
    %v246 = vpack.c.b16 %v236, %v235
    %v247 = vpack.c.b16 %v238, %v237
    %v248 = vpack.c.b16 %v240, %v239
    %257 = vmatprep.subr.bf16.mxu0 0
    %258 = vmatpush1.bf16.msra.mxu0 %v248
    %259 = vmatprep.subr.bf16.mxu0 0
    %260 = vmatpush1.bf16.msra.mxu0 %v247
    %261 = vmatprep.subr.bf16.mxu0 0
    %262 = vmatpush1.bf16.msra.mxu0 %v246
    %263 = vmatprep.subr.bf16.mxu0 0
    %264 = vmatpush1.bf16.msra.mxu0 %v245
    %265 = vmatprep.subr.bf16.mxu0 0
    %266 = vmatpush1.bf16.msra.mxu0 %v244
    %267 = vmatprep.subr.bf16.mxu0 0
    %268 = vmatpush1.bf16.msra.mxu0 %v243
    %269 = vmatprep.subr.bf16.mxu0 0
    %270 = vmatpush1.bf16.msra.mxu0 %v242
    %271 = vmatprep.subr.bf16.mxu0 0
    %272 = vmatpush1.bf16.msra.mxu0 %v241
    %273 = vmatprep.subr.bf16.mxu0 0
    %274 = vmatpush2.bf16.msra.mxu0 0
    %275 = vmatprep.subr.bf16.mxu0 0
    %276 = vmatpush2.bf16.msra.mxu0 0
    %277 = vmatprep.subr.bf16.mxu0 0
    %278 = vmatpush2.bf16.msra.mxu0 0
    %279 = vmatprep.subr.bf16.mxu0 0
    %280 = vmatpush2.bf16.msra.mxu0 0
    %281 = vmatprep.subr.bf16.mxu0 0
    %282 = vmatpush2.bf16.msra.mxu0 0
    %283 = vmatprep.subr.bf16.mxu0 0
    %284 = vmatpush2.bf16.msra.mxu0 0
    %285 = vmatprep.subr.bf16.mxu0 0
    %286 = vmatpush2.bf16.msra.mxu0 0
    %287 = vmatprep.subr.bf16.mxu0 0
    %288 = vmatpush2.bf16.msra.mxu0 0
    %289 = vmatprep.mubr.bf16.mxu0 0
    %290 = vmatmul.mubr.bf16.gmra.mxu0 %v185
    %v291 = vpop.f32.mrf.mxu0
    %v292 = vadd.f32 %v207, %v291
    %v293 = vpop.f32.mrf.mxu0
    %v294 = vpop.f32.mrf.mxu0
    %v295 = vadd.f32 %v207, %v294
    %v296 = vpop.f32.mrf.mxu0
    %297 = vdwg.mxu0
    %v298 = vpack.c.bf16 %v295, %v292
    %v299 = vld [vmem:[#allocation6] sm:$0xf]
    %v300 = vld [vmem:[#allocation6 + $0x4] sm:$0xf]
    %v301 = vld [vmem:[#allocation6 + $0x8] sm:$0xf]
    %v302 = vld [vmem:[#allocation6 + $0xc] sm:$0xf]
    %v303 = vld [vmem:[#allocation6 + $0x10] sm:$0xf]
    %v304 = vld [vmem:[#allocation6 + $0x14] sm:$0xf]
    %v305 = vld [vmem:[#allocation6 + $0x18] sm:$0xf]
    %v306 = vld [vmem:[#allocation6 + $0x1c] sm:$0xf]
    %v307 = vld [vmem:[#allocation6 + $0x20] sm:$0xf]
    %v308 = vld [vmem:[#allocation6 + $0x24] sm:$0xf]
    %v309 = vld [vmem:[#allocation6 + $0x28] sm:$0xf]
    %v310 = vld [vmem:[#allocation6 + $0x2c] sm:$0xf]
    %v311 = vld [vmem:[#allocation6 + $0x30] sm:$0xf]
    %v312 = vld [vmem:[#allocation6 + $0x34] sm:$0xf]
    %v313 = vld [vmem:[#allocation6 + $0x38] sm:$0xf]
    %v314 = vld [vmem:[#allocation6 + $0x3c] sm:$0xf]
    %v315 = vld [vmem:[%s6] sm:$0x1]
    %v317 = vlaneseq
    %v318 = vshrl.u32 %v317, 7
    %v319 = vsub.s32 0, %v318
    %v320 = vrot.slane %v315, %v319
    %v338 = vunpack.c.l.b16 %v299
    %v339 = vunpack.c.l.b16 %v300
    %v340 = vunpack.c.l.b16 %v301
    %v341 = vunpack.c.l.b16 %v302
    %v342 = vunpack.c.l.b16 %v303
    %v343 = vunpack.c.l.b16 %v304
    %v344 = vunpack.c.l.b16 %v305
    %v345 = vunpack.c.l.b16 %v306
    %v346 = vunpack.c.l.b16 %v307
    %v347 = vunpack.c.l.b16 %v308
    %v348 = vunpack.c.l.b16 %v309
    %v349 = vunpack.c.l.b16 %v310
    %v350 = vunpack.c.l.b16 %v311
    %v351 = vunpack.c.l.b16 %v312
    %v352 = vunpack.c.l.b16 %v313
    %v353 = vunpack.c.l.b16 %v314
    %v354 = vpack.c.b16 %v339, %v338
    %v355 = vpack.c.b16 %v341, %v340
    %v356 = vpack.c.b16 %v343, %v342
    %v357 = vpack.c.b16 %v345, %v344
    %v358 = vpack.c.b16 %v347, %v346
    %v359 = vpack.c.b16 %v349, %v348
    %v360 = vpack.c.b16 %v351, %v350
    %v361 = vpack.c.b16 %v353, %v352
    %370 = vmatprep.subr.bf16.mxu0 0
    %371 = vmatpush1.bf16.msra.mxu0 %v361
    %372 = vmatprep.subr.bf16.mxu0 0
    %373 = vmatpush1.bf16.msra.mxu0 %v360
    %374 = vmatprep.subr.bf16.mxu0 0
    %375 = vmatpush1.bf16.msra.mxu0 %v359
    %376 = vmatprep.subr.bf16.mxu0 0
    %377 = vmatpush1.bf16.msra.mxu0 %v358
    %378 = vmatprep.subr.bf16.mxu0 0
    %379 = vmatpush1.bf16.msra.mxu0 %v357
    %380 = vmatprep.subr.bf16.mxu0 0
    %381 = vmatpush1.bf16.msra.mxu0 %v356
    %382 = vmatprep.subr.bf16.mxu0 0
    %383 = vmatpush1.bf16.msra.mxu0 %v355
    %384 = vmatprep.subr.bf16.mxu0 0
    %385 = vmatpush1.bf16.msra.mxu0 %v354
    %386 = vmatprep.subr.bf16.mxu0 0
    %387 = vmatpush2.bf16.msra.mxu0 0
    %388 = vmatprep.subr.bf16.mxu0 0
    %389 = vmatpush2.bf16.msra.mxu0 0
    %390 = vmatprep.subr.bf16.mxu0 0
    %391 = vmatpush2.bf16.msra.mxu0 0
    %392 = vmatprep.subr.bf16.mxu0 0
    %393 = vmatpush2.bf16.msra.mxu0 0
    %394 = vmatprep.subr.bf16.mxu0 0
    %395 = vmatpush2.bf16.msra.mxu0 0
    %396 = vmatprep.subr.bf16.mxu0 0
    %397 = vmatpush2.bf16.msra.mxu0 0
    %398 = vmatprep.subr.bf16.mxu0 0
    %399 = vmatpush2.bf16.msra.mxu0 0
    %400 = vmatprep.subr.bf16.mxu0 0
    %401 = vmatpush2.bf16.msra.mxu0 0
    %402 = vmatprep.mubr.bf16.mxu0 0
    %403 = vmatmul.mubr.bf16.gmra.mxu0 %v298
    %v404 = vpop.f32.mrf.mxu0
    %v405 = vadd.f32 %v320, %v404
    %v406 = vpop.f32.mrf.mxu0
    %v407 = vpop.f32.mrf.mxu0
    %v408 = vadd.f32 %v320, %v407
    %v409 = vpop.f32.mrf.mxu0
    %410 = vdwg.mxu0
    %411 = vst [vmem:[%s7] sm:$0xff] %v405
    %412 = vst [vmem:[%s7 + $0x8] sm:$0xff] %v408
    // Predicated region
    $region42: #{fully_connected_forward.1} parent=1 // pred_check
      _
    $region43: #{fully_connected_forward.1} parent=1 // pred_check_branch
      %414 = sbr.rel (0) target = $region45
    $region44: #{fully_connected_forward.1} parent=1 // pred_region
      _
    $region45: #{fully_connected_forward.1} parent=1 // pred_fallthru
      _
    // Predicated region
    $region46: #{fully_connected_forward.1} parent=1 // pred_check
      _
    $region47: #{fully_connected_forward.1} parent=1 // pred_check_branch
      %416 = sbr.rel (0) target = $region49
    $region48: #{fully_connected_forward.1} parent=1 // pred_region
      _
    $region49: #{fully_connected_forward.1} parent=1 // pred_fallthru
      _
    %417 = vsyncpa [#allocation3], 1
    %418 = vsyncpa [#allocation5], 1

</llo_original>
